<compile_context>
chip_gen: v5e
topology: v5e:2x2
jax: 0.10.0
libtpu: 0.0.40
codegen_flags: <defaults>
</compile_context>

<pallas_src>
import math

import jax
import jax.numpy as jnp
from jax.experimental import pallas as pl
from jax.experimental.pallas import tpu as pltpu

_LANE_WIDTH = 1024    # multiple of 128 -> lane-dense, unmasked wide stores
_SUBLANE = 8          # f32 sublane granule; tile_rows kept a multiple of this
_SMALL_ROWS = 512     # <= this many 1024-lane rows -> single grid=1 copy


def _copy_kernel(x_ref, o_ref):
    # Identity pass-through: one wide store per tile.
    o_ref[...] = x_ref[...]


def _round_up(a: int, b: int) -> int:
    return pl.cdiv(a, b) * b


def _chip_tile_config():
    """Per-TPU-generation (tile_rows_cap, vmem_limit_bytes) for the slab path."""
    try:
        kind = jax.devices()[0].device_kind.lower()
    except Exception:  # no device info -> conservative defaults
        kind = ""
    if "v7" in kind:
        # 8 MiB f32 tile; in+out double-buffered ~32 MiB < 64 MiB physical VMEM.
        return 2048, 48 << 20
    if "v6" in kind:
        # 4 MiB f32 tile; raise the 32 MiB scoped default for headroom.
        return 1024, 48 << 20
    # v5e (16 MiB scoped VMEM default) and unknown chips: 2 MiB tile, defaults.
    return 512, None


def pallas_identity_copy(x: jax.Array) -> jax.Array:
    """Materialize a fresh copy of `x` with a Pallas TPU kernel (no pad/slice)."""
    if x.size == 0:
        return x

    orig_shape = x.shape
    n = x.size
    dtype = x.dtype
    tile_rows_cap, vmem_limit = _chip_tile_config()

    # Lane-dense tiled slab path: only when no padding would be required and
    # the array is big enough that tiling/pipelining pays for itself.
    if n % _LANE_WIDTH == 0:
        rows = n // _LANE_WIDTH
        if rows > _SMALL_ROWS:
            x2d = x.reshape(rows, _LANE_WIDTH)
            # Grid >= 2 (both v7x TensorCores busy), tile a multiple of 8 rows,
            # capped by the per-chip VMEM budget.
            tile_rows = min(
                tile_rows_cap,
                max(_SUBLANE, _round_up(pl.cdiv(rows, 2), _SUBLANE)),
            )
            grid = pl.cdiv(rows, tile_rows)  # ragged last block is masked
            cp = dict(dimension_semantics=("parallel",))
            if vmem_limit is not None:
                cp["vmem_limit_bytes"] = vmem_limit
            y2d = pl.pallas_call(
                _copy_kernel,
                out_shape=jax.ShapeDtypeStruct((rows, _LANE_WIDTH), dtype),
                grid=(grid,),
                in_specs=[pl.BlockSpec((tile_rows, _LANE_WIDTH),
                                       lambda i: (i, 0))],
                out_specs=pl.BlockSpec((tile_rows, _LANE_WIDTH),
                                       lambda i: (i, 0)),
                compiler_params=pltpu.CompilerParams(**cp),
            )(x2d)
            return y2d.reshape(orig_shape)

    # Small / ragged path: single whole-array grid=1 copy, no padding, no slice.
    # TODO(synk): a huge array whose size is not a multiple of 1024 would need
    #             a leading-dim tiling here; not required for this module.
    if x.ndim >= 2:
        lead = math.prod(orig_shape[:-1])
        x2d = x.reshape(lead, orig_shape[-1])
    else:
        x2d = x.reshape(1, n)
    y2d = pl.pallas_call(
        _copy_kernel,
        out_shape=jax.ShapeDtypeStruct(x2d.shape, dtype),
    )(x2d)
    return y2d.reshape(orig_shape)


def basic_model_forward(x: jax.Array, *, materialize: bool = False) -> jax.Array:
    """Pallas 'forward' for BasicModel.

    BasicModel.forward is abstract, so the only faithful semantics is identity.
    The default path returns `x` unchanged (zero HBM traffic, per perf review).
    `materialize=True` runs the tiled Pallas copy kernel to produce a freshly
    materialized buffer with identical contents.
    """
    if materialize:
        return pallas_identity_copy(x)
    return x


class BasicModelJAX:
    """JAX mirror of the PyTorch BasicModel bookkeeping (no learnable params)."""

    def __init__(self, hp):
        self._hp = hp
        self._epoch = 0
        self._step = 0
        # BasicModel.__init__ registers no parameters; nothing to initialize.
        self._params = {}

    def forward(self, x: jax.Array, *, materialize: bool = False) -> jax.Array:
        return basic_model_forward(x, materialize=materialize)

    def get_epoch_num(self):
        return self._epoch

    def get_step_num(self):
        return self._step

    def get_embed_length(self) -> int:
        return self._hp["embed_dim"]

    def get_ce_embed_length(self) -> int:
        return self._hp["ce"]["output_dims"]

    def model_size(self) -> int:
        return sum(int(p.size) for p in self._params.values())


if __name__ == "__main__":
    hp = {"embed_dim": 32, "ce": {"output_dims": 16}}
    model = BasicModelJAX(hp)

    key = jax.random.PRNGKey(0)

    # Small deterministic input consistent with the module:
    # (batch=2, seq=8, embed_dim=32).
    x_small = jax.random.normal(key, (2, 8, hp["embed_dim"]), dtype=jnp.float32)
    x_small_host = jax.device_get(x_small)

    # Default (zero-cost identity) path.
    y_id = jax.block_until_ready(model.forward(x_small))
    assert y_id.shape == x_small.shape and y_id.dtype == x_small.dtype
    assert jnp.allclose(y_id, jnp.asarray(x_small_host))

    # Explicit Pallas kernel, small path: single grid=1 whole-array copy
    # (no padding, no slab machinery).
    y_small = jax.block_until_ready(model.forward(x_small, materialize=True))
    assert y_small.shape == x_small.shape and y_small.dtype == x_small.dtype
    assert jnp.allclose(y_small, jnp.asarray(x_small_host))

    # Larger input exercising the tiled, pipelined, multi-block slab path
    # (n % 1024 == 0, rows = 1024 > _SMALL_ROWS -> grid >= 2).
    k2 = jax.random.fold_in(key, 1)
    x_big = jax.random.normal(k2, (4, 1024, 256), dtype=jnp.float32)
    x_big_host = jax.device_get(x_big)
    y_big = jax.block_until_ready(model.forward(x_big, materialize=True))
    assert y_big.shape == x_big.shape and y_big.dtype == x_big.dtype
    assert jnp.allclose(y_big, jnp.asarray(x_big_host))

    assert model.get_embed_length() == 32
    assert model.get_ce_embed_length() == 16
    assert model.model_size() == 0  # base class registers no parameters

    print("KERNEL_OK")
</pallas_src>

<mosaic_0001>
module attributes {stable_mosaic.version = 11 : i64} {
  func.func @_copy_kernel(%arg0: memref<16x32xf32, #tpu.memory_space<vmem>>, %arg1: memref<16x32xf32, #tpu.memory_space<vmem>>) attributes {dimension_semantics = [], scalar_prefetch = 0 : i64, scratch_operands = 0 : i64, tpu.core_type = #tpu.core_type<tc>} {
    %c0 = arith.constant 0 : index
    %c0_0 = arith.constant 0 : index
    %0 = vector.load %arg0[%c0, %c0_0] : memref<16x32xf32, #tpu.memory_space<vmem>>, vector<16x32xf32>
    %c0_1 = arith.constant 0 : index
    %c0_2 = arith.constant 0 : index
    %1 = vector.load %arg1[%c0_1, %c0_2] : memref<16x32xf32, #tpu.memory_space<vmem>>, vector<16x32xf32>
    tpu.vector_store %arg1[%c0_1, %c0_2], %0 {strides = array<i32>} : memref<16x32xf32, #tpu.memory_space<vmem>>, vector<16x32xf32>,
    return
  }
}

</mosaic_0001>

<llo_original>
// kernel: tpu_custom_call.1
$region0: #{tpu_custom_call.1}
  #allocation0 [shape = 'u32[]', space=smem, size = 0x4, offset = 0x4, fixed_abs, tag = 'smem constant byte address 0x4 - core index']
  #allocation1 [shape = 'u32[72,128]{1,0:T(1,128)}', space=vmem, size = 0x9000, scoped, tag = 'internal scratch']
  %s0 = inlined_call_operand.hbm [shape: f32[16,32], index: 0, kind: input, shape index: {}]
  %s1 = inlined_call_operand.hbm [shape: f32[16,32], index: 1, kind: output, shape index: {}]
  %s2 = sld [smem:[#allocation0]]
  $region18: #{tpu_custom_call.1} parent=0
    _
  %s4 = ssub.s32 1, %s2
  %s5 = scalar_select 0, %s4, %s2
  $region1: #{tpu_custom_call.1} parent=0
    #allocation2 [shape = 'u8[8192]{0}', space=vmem, size = 0x2000, scoped, tag = 'input window, operand 0, single buffered']
    #allocation3 [shape = 's32[1]{0}', space=sflag, size = 0x4, scoped, tag = 'scoped memory for tpu_custom_call.1']
    #allocation4 [shape = 's32[1]{0}', space=sflag, size = 0x4, scoped, tag = 'scoped memory for tpu_custom_call.1']
    #allocation5 [shape = 'u8[8192]{0}', space=vmem, size = 0x2000, scoped, tag = 'output window, operand 0, single buffered']
    %6 = vsyncpa [#allocation3], 0
    %7 = vsyncpa [#allocation4], 0
    // Predicated region
    $region2: #{tpu_custom_call.1} parent=1 // pred_check
      _
    $region3: #{tpu_custom_call.1} parent=1 // pred_check_branch
      %9 = sbr.rel (0) target = $region5
    $region4: #{tpu_custom_call.1} parent=1 // pred_region
      %11 = vsyncadd [#allocation3], 0
      %s12 = sshll.u32 %s0, 4
      %s13 = int_to_ptr.hbm [resolvable:$true] %s12
      %s14 = sshll.u32 [#allocation2], 4
      %s15 = int_to_ptr.vmem [resolvable:$true] %s14
      %20 = dma.hbm_to_vmem [thread:$0]  %s13, 256, %s15, [#allocation3], 128, 128, 8
    $region5: #{tpu_custom_call.1} parent=1 // pred_fallthru
      _
    // Predicated region
    $region6: #{tpu_custom_call.1} parent=1 // pred_check
      _
    $region7: #{tpu_custom_call.1} parent=1 // pred_check_branch
      %22 = sbr.rel (0) target = $region9
    $region8: #{tpu_custom_call.1} parent=1 // pred_region
      %24 = dma.done [#allocation3], 256
    $region9: #{tpu_custom_call.1} parent=1 // pred_fallthru
      _
    %v25 = vld [vmem:[#allocation2] sm:$0xff]
    %v26 = vld [vmem:[#allocation2 + $0x8] sm:$0xff]
    %vm27 = vcmask 261120
    %28 = vst.msk [vmem:[#allocation5] sm:$0xff] %vm27, %v25
    %29 = vst.msk [vmem:[#allocation5 + $0x8] sm:$0xff] %vm27, %v26
    // Predicated region
    $region10: #{tpu_custom_call.1} parent=1 // pred_check
      _
    $region11: #{tpu_custom_call.1} parent=1 // pred_check_branch
      %31 = sbr.rel (0) target = $region13
    $region12: #{tpu_custom_call.1} parent=1 // pred_region
      %33 = vsyncadd [#allocation4], 0
      %s34 = sshll.u32 [#allocation5], 4
      %s35 = int_to_ptr.vmem [resolvable:$true] %s34
      %s36 = sshll.u32 %s1, 4
      %s37 = int_to_ptr.hbm [resolvable:$true] %s36
      %42 = dma.vmem_to_hbm [thread:$0]  %s35, 256, %s37, [#allocation4], 128, 128, 8
    $region13: #{tpu_custom_call.1} parent=1 // pred_fallthru
      _
    // Predicated region
    $region14: #{tpu_custom_call.1} parent=1 // pred_check
      _
    $region15: #{tpu_custom_call.1} parent=1 // pred_check_branch
      %44 = sbr.rel (0) target = $region17
    $region16: #{tpu_custom_call.1} parent=1 // pred_region
      %46 = dma.done [#allocation4], 256
    $region17: #{tpu_custom_call.1} parent=1 // pred_fallthru
      _
    %47 = vsyncpa [#allocation3], 1
    %48 = vsyncpa [#allocation4], 1

</llo_original>
